<compile_context>
chip_gen: v7x
topology: tpu7x:2x2x1
jax: 0.10.0
libtpu: 0.0.40
codegen_flags: <defaults>
</compile_context>

<pallas_src>
import jax
import jax.numpy as jnp
from jax.experimental import pallas as pl
from jax.experimental.pallas import tpu as pltpu


def _softplus(x):
    # numerically stable softplus, matches F.softplus default (beta=1)
    return jnp.maximum(x, 0.0) + jnp.log1p(jnp.exp(-jnp.abs(x)))


def _round_up(x, m):
    return ((x + m - 1) // m) * m


def gaussian_nn_kernel(x_ref, w1_ref, b1_ref, w2_ref, b2_ref,
                       w3m_ref, b3m_ref, w3v_ref, b3v_ref,
                       maxlv_ref, minlv_ref, out_ref):
    # Compute dtype for the MXU follows the weight dtype (f32 or bf16);
    # accumulation and the whole epilogue stay in f32.
    cdt = w1_ref.dtype
    x = x_ref[...].astype(cdt)

    h = jnp.tanh(jnp.dot(x, w1_ref[...], preferred_element_type=jnp.float32)
                 + b1_ref[...].astype(jnp.float32))
    h = jnp.tanh(jnp.dot(h.astype(cdt), w2_ref[...],
                         preferred_element_type=jnp.float32)
                 + b2_ref[...].astype(jnp.float32))
    h = h.astype(cdt)

    # Output layer split into mean / logvar halves (no lane-slice of a matmul
    # result); column order matches the original [mean || logvar] packing.
    mean = (jnp.dot(h, w3m_ref[...], preferred_element_type=jnp.float32)
            + b3m_ref[...].astype(jnp.float32))
    logvar = (jnp.dot(h, w3v_ref[...], preferred_element_type=jnp.float32)
              + b3v_ref[...].astype(jnp.float32))

    max_lv = maxlv_ref[...]  # [1, D] f32
    min_lv = minlv_ref[...]  # [1, D] f32

    # soft clipping of the state-dependent logvar
    logvar = max_lv - _softplus(max_lv - logvar)
    logvar = min_lv + _softplus(logvar - min_lv)

    # Normal(mean, sqrt(exp(logvar)))
    std = jnp.exp(0.5 * logvar)

    # Single full-width store of the packed [mean || std] tile (both halves
    # live in the same 128-lane tile, so this is one store, not two masked).
    out_ref[...] = jnp.concatenate([mean, std], axis=-1).astype(out_ref.dtype)


def _vmem_budget_bytes():
    """Per-generation usable VMEM budget (leave ~25% headroom for Mosaic)."""
    try:
        cap = int(pltpu.get_tpu_info().vmem_capacity_bytes)
    except Exception:
        cap = 64 * 1024 * 1024  # conservative fallback (v7x-sized)
    return (cap * 3) // 4       # ~96 MiB on v5e/v6e (128), ~48 MiB on v7x (64)


def _plan_tiling(B, F, H, D, x_itemsize, p_itemsize, max_tile_b, min_grid_steps):
    """Pick a batch tile + scoped-VMEM limit; keep >=min_grid_steps when B allows."""
    weight_bytes = (F * H + H + H * H + H + 2 * (H * D + D)) * p_itemsize
    weight_bytes += 2 * D * 4  # max/min logvar (f32)
    budget = _vmem_budget_bytes()

    # ~B / min_grid_steps rows per tile (so v7x can shard the grid across its
    # two TensorCores), capped by max_tile_b, rounded to a sublane multiple.
    tb = _round_up(max(1, -(-B // max(1, min_grid_steps))), 8)
    tb = min(tb, max(8, _round_up(max_tile_b, 8)))
    tb = max(8, tb)

    while True:
        stream_bytes = tb * F * x_itemsize + tb * 2 * D * 4
        # Conservative: count residents double-buffered too (they are tiny).
        total = 2 * weight_bytes + 2 * stream_bytes
        if total <= budget or tb <= 8:
            break
        tb = max(8, _round_up(tb // 2, 8))

    vmem_limit = int(min(max(total + (4 << 20), 32 << 20), budget))
    vmem_limit = max(vmem_limit, total)
    return tb, vmem_limit


def gaussian_nn_forward(x, params, *, max_tile_b=2048, min_grid_steps=2,
                        return_packed=False):
    """Fused GaussianNN forward pass.

    Returns (mean, std), or the packed (B, 2D) [mean || std] slab when
    return_packed=True (avoids two wrapper-side output-slicing copies).
    """
    B, F = x.shape
    D = params["max_logvar"].shape[-1]      # output_dim (per-dim Gaussian)
    H = params["w1"].shape[-1]

    # Split the output layer at parameter-prep time (free; removes in-kernel
    # lane extraction of the [mean || logvar] halves).
    w3m, w3v = params["w3"][:, :D], params["w3"][:, D:]
    b3m, b3v = params["b3"][:, :D], params["b3"][:, D:]

    TB, vmem_limit = _plan_tiling(
        B, F, H, D,
        jnp.dtype(x.dtype).itemsize, jnp.dtype(params["w1"].dtype).itemsize,
        max_tile_b, min_grid_steps)

    # Ragged last tile is handled by Pallas block padding: OOB reads only feed
    # rows that are never written back (all compute is row-local), OOB writes
    # are masked. No jnp.pad copy of x in HBM.
    grid = (pl.cdiv(B, TB),)

    # Weights / biases / clip params: constant index_map -> DMA'd once and kept
    # VMEM-resident across all grid steps.
    resident = lambda a: pl.BlockSpec(a.shape, lambda i: (0,) * a.ndim)
    weights = (params["w1"], params["b1"], params["w2"], params["b2"],
               w3m, b3m, w3v, b3v,
               params["max_logvar"], params["min_logvar"])

    packed = pl.pallas_call(
        gaussian_nn_kernel,
        out_shape=jax.ShapeDtypeStruct((B, 2 * D), jnp.float32),
        grid=grid,
        in_specs=[pl.BlockSpec((TB, F), lambda i: (i, 0))]
                 + [resident(a) for a in weights],
        out_specs=pl.BlockSpec((TB, 2 * D), lambda i: (i, 0)),
        compiler_params=pltpu.CompilerParams(
            dimension_semantics=("parallel",),   # batch shards across v7x's 2 TCs
            vmem_limit_bytes=vmem_limit),
    )(x, *weights)

    if return_packed:
        return packed
    return packed[:, :D], packed[:, D:]


def init_params(key, input_dim, output_dim, hidden,
                var_clipping_low=-10.0, var_clipping_high=0.5,
                param_dtype=jnp.float32):
    """Deterministic synthetic parameters matching the module's shapes.

    bf16 param_dtype is MXU-native on every generation (incl. v5e) and is the
    recommended production setting; f32 is kept as default here for the exact
    check against the pure-JAX reference.
    """
    k1, k2, k3, k4, k5, k6 = jax.random.split(key, 6)
    out2 = output_dim * 2  # GaussianNN doubles output_dim for (mean, logvar)
    scale = 0.1

    def rnd(k, shape):
        return (scale * jax.random.normal(k, shape, jnp.float32)).astype(param_dtype)

    return {
        "w1": rnd(k1, (input_dim, hidden)),
        "b1": rnd(k2, (1, hidden)),
        "w2": rnd(k3, (hidden, hidden)),
        "b2": rnd(k4, (1, hidden)),
        "w3": rnd(k5, (hidden, out2)),
        "b3": rnd(k6, (1, out2)),
        # nn.Parameter(ones(1, D) * clip) — kept in f32 (clip params)
        "max_logvar": jnp.full((1, output_dim), var_clipping_high, jnp.float32),
        "min_logvar": jnp.full((1, output_dim), var_clipping_low, jnp.float32),
        # TODO(synk): state_dependent_var=False path (learned constant logvar
        # parameter) is not exercised here; this kernel implements the
        # state-dependent-variance branch of forward().
    }


def reference_forward(x, params):
    f32 = lambda a: a.astype(jnp.float32)
    D = params["max_logvar"].shape[-1]
    h = jnp.tanh(x @ f32(params["w1"]) + f32(params["b1"]))
    h = jnp.tanh(h @ f32(params["w2"]) + f32(params["b2"]))
    out = h @ f32(params["w3"]) + f32(params["b3"])
    mean, logvar = out[:, :D], out[:, D:]
    logvar = params["max_logvar"] - jax.nn.softplus(params["max_logvar"] - logvar)
    logvar = params["min_logvar"] + jax.nn.softplus(logvar - params["min_logvar"])
    return mean, jnp.exp(0.5 * logvar)


if __name__ == "__main__":
    key = jax.random.PRNGKey(0)
    kx, kp = jax.random.split(key)

    # B=50 is deliberately not a multiple of the tile: exercises the ragged
    # last-block path (no wrapper pad); max_tile_b=16 gives a 4-step grid.
    B, INPUT_DIM, OUTPUT_DIM, HIDDEN = 50, 16, 8, 32
    x = jax.random.normal(kx, (B, INPUT_DIM), jnp.float32)

    # f32 params: exact check against the pure-JAX reference.
    params = init_params(kp, INPUT_DIM, OUTPUT_DIM, HIDDEN)
    mean, std = gaussian_nn_forward(x, params, max_tile_b=16)
    jax.block_until_ready((mean, std))
    ref_mean, ref_std = reference_forward(x, params)
    assert mean.shape == (B, OUTPUT_DIM) and std.shape == (B, OUTPUT_DIM)
    assert jnp.allclose(mean, ref_mean, atol=1e-5, rtol=1e-5)
    assert jnp.allclose(std, ref_std, atol=1e-5, rtol=1e-5)

    # Default tiling (TB ~= B/2 -> 2 "parallel" grid steps) + packed slab out.
    packed = gaussian_nn_forward(x, params, return_packed=True)
    jax.block_until_ready(packed)
    assert packed.shape == (B, 2 * OUTPUT_DIM)
    assert jnp.allclose(packed[:, :OUTPUT_DIM], ref_mean, atol=1e-5, rtol=1e-5)
    assert jnp.allclose(packed[:, OUTPUT_DIM:], ref_std, atol=1e-5, rtol=1e-5)

    # bf16 weights (MXU-native on v5e/v6e/v7x), f32 accumulation + f32 epilogue.
    params_bf16 = init_params(kp, INPUT_DIM, OUTPUT_DIM, HIDDEN,
                              param_dtype=jnp.bfloat16)
    mean16, std16 = gaussian_nn_forward(x, params_bf16)
    jax.block_until_ready((mean16, std16))
    assert jnp.allclose(mean16, ref_mean, atol=3e-2, rtol=3e-2)
    assert jnp.allclose(std16, ref_std, atol=3e-2, rtol=3e-2)

    print("KERNEL_OK")
</pallas_src>

<mosaic_0001>
module attributes {stable_mosaic.version = 11 : i64} {
  func.func @gaussian_nn_kernel(%arg0: i32, %arg1: memref<16x16xf32, #tpu.memory_space<vmem>>, %arg2: memref<16x32xf32, #tpu.memory_space<vmem>>, %arg3: memref<1x32xf32, #tpu.memory_space<vmem>>, %arg4: memref<32x32xf32, #tpu.memory_space<vmem>>, %arg5: memref<1x32xf32, #tpu.memory_space<vmem>>, %arg6: memref<32x8xf32, #tpu.memory_space<vmem>>, %arg7: memref<1x8xf32, #tpu.memory_space<vmem>>, %arg8: memref<32x8xf32, #tpu.memory_space<vmem>>, %arg9: memref<1x8xf32, #tpu.memory_space<vmem>>, %arg10: memref<1x8xf32, #tpu.memory_space<vmem>>, %arg11: memref<1x8xf32, #tpu.memory_space<vmem>>, %arg12: memref<16x16xf32, #tpu.memory_space<vmem>>) attributes {dimension_semantics = [#tpu.dimension_semantics<parallel>], iteration_bounds = array<i64: 4>, scalar_prefetch = 0 : i64, scratch_operands = 0 : i64, tpu.core_type = #tpu.core_type<tc>, window_params = [{transform_indices = @transform_0, window_bounds = array<i64: 16, 16>}, {pipeline_mode = #tpu.pipeline_mode<synchronous>, transform_indices = @transform_1, window_bounds = array<i64: 16, 32>}, {pipeline_mode = #tpu.pipeline_mode<synchronous>, transform_indices = @transform_2, window_bounds = array<i64: 1, 32>}, {pipeline_mode = #tpu.pipeline_mode<synchronous>, transform_indices = @transform_3, window_bounds = array<i64: 32, 32>}, {pipeline_mode = #tpu.pipeline_mode<synchronous>, transform_indices = @transform_4, window_bounds = array<i64: 1, 32>}, {pipeline_mode = #tpu.pipeline_mode<synchronous>, transform_indices = @transform_5, window_bounds = array<i64: 32, 8>}, {pipeline_mode = #tpu.pipeline_mode<synchronous>, transform_indices = @transform_6, window_bounds = array<i64: 1, 8>}, {pipeline_mode = #tpu.pipeline_mode<synchronous>, transform_indices = @transform_7, window_bounds = array<i64: 32, 8>}, {pipeline_mode = #tpu.pipeline_mode<synchronous>, transform_indices = @transform_8, window_bounds = array<i64: 1, 8>}, {pipeline_mode = #tpu.pipeline_mode<synchronous>, transform_indices = @transform_9, window_bounds = array<i64: 1, 8>}, {pipeline_mode = #tpu.pipeline_mode<synchronous>, transform_indices = @transform_10, window_bounds = array<i64: 1, 8>}, {transform_indices = @transform_11, window_bounds = array<i64: 16, 16>}]} {
    %c0 = arith.constant 0 : index
    %c0_0 = arith.constant 0 : index
    %0 = vector.load %arg1[%c0, %c0_0] : memref<16x16xf32, #tpu.memory_space<vmem>>, vector<16x16xf32>
    %c0_1 = arith.constant 0 : index
    %c0_2 = arith.constant 0 : index
    %1 = vector.load %arg2[%c0_1, %c0_2] : memref<16x32xf32, #tpu.memory_space<vmem>>, vector<16x32xf32>
    %cst = arith.constant dense<0.000000e+00> : vector<16x32xf32>
    %2 = tpu.matmul %0, %1, %cst {dimension_numbers = #tpu.dot_dimension_numbers<[1], [0], [0], [1], [0, 0, 1, 1], [], []>} : vector<16x16xf32>, vector<16x32xf32>, vector<16x32xf32> -> vector<16x32xf32>
    %c0_3 = arith.constant 0 : index
    %c0_4 = arith.constant 0 : index
    %3 = vector.load %arg3[%c0_3, %c0_4] : memref<1x32xf32, #tpu.memory_space<vmem>>, vector<1x32xf32>
    %4 = vector.broadcast %3 : vector<1x32xf32> to vector<16x32xf32>
    %5 = arith.addf %2, %4 : vector<16x32xf32>
    %6 = math.tanh %5 : vector<16x32xf32>
    %c0_5 = arith.constant 0 : index
    %c0_6 = arith.constant 0 : index
    %7 = vector.load %arg4[%c0_5, %c0_6] : memref<32x32xf32, #tpu.memory_space<vmem>>, vector<32x32xf32>
    %cst_7 = arith.constant dense<0.000000e+00> : vector<16x32xf32>
    %8 = tpu.matmul %6, %7, %cst_7 {dimension_numbers = #tpu.dot_dimension_numbers<[1], [0], [0], [1], [0, 0, 1, 1], [], []>} : vector<16x32xf32>, vector<32x32xf32>, vector<16x32xf32> -> vector<16x32xf32>
    %c0_8 = arith.constant 0 : index
    %c0_9 = arith.constant 0 : index
    %9 = vector.load %arg5[%c0_8, %c0_9] : memref<1x32xf32, #tpu.memory_space<vmem>>, vector<1x32xf32>
    %10 = vector.broadcast %9 : vector<1x32xf32> to vector<16x32xf32>
    %11 = arith.addf %8, %10 : vector<16x32xf32>
    %12 = math.tanh %11 : vector<16x32xf32>
    %c0_10 = arith.constant 0 : index
    %c0_11 = arith.constant 0 : index
    %13 = vector.load %arg6[%c0_10, %c0_11] : memref<32x8xf32, #tpu.memory_space<vmem>>, vector<32x8xf32>
    %cst_12 = arith.constant dense<0.000000e+00> : vector<16x8xf32>
    %14 = tpu.matmul %12, %13, %cst_12 {dimension_numbers = #tpu.dot_dimension_numbers<[1], [0], [0], [1], [0, 0, 1, 1], [], []>} : vector<16x32xf32>, vector<32x8xf32>, vector<16x8xf32> -> vector<16x8xf32>
    %c0_13 = arith.constant 0 : index
    %c0_14 = arith.constant 0 : index
    %15 = vector.load %arg7[%c0_13, %c0_14] : memref<1x8xf32, #tpu.memory_space<vmem>>, vector<1x8xf32>
    %16 = vector.broadcast %15 : vector<1x8xf32> to vector<16x8xf32>
    %17 = arith.addf %14, %16 : vector<16x8xf32>
    %c0_15 = arith.constant 0 : index
    %c0_16 = arith.constant 0 : index
    %18 = vector.load %arg8[%c0_15, %c0_16] : memref<32x8xf32, #tpu.memory_space<vmem>>, vector<32x8xf32>
    %cst_17 = arith.constant dense<0.000000e+00> : vector<16x8xf32>
    %19 = tpu.matmul %12, %18, %cst_17 {dimension_numbers = #tpu.dot_dimension_numbers<[1], [0], [0], [1], [0, 0, 1, 1], [], []>} : vector<16x32xf32>, vector<32x8xf32>, vector<16x8xf32> -> vector<16x8xf32>
    %c0_18 = arith.constant 0 : index
    %c0_19 = arith.constant 0 : index
    %20 = vector.load %arg9[%c0_18, %c0_19] : memref<1x8xf32, #tpu.memory_space<vmem>>, vector<1x8xf32>
    %21 = vector.broadcast %20 : vector<1x8xf32> to vector<16x8xf32>
    %22 = arith.addf %19, %21 : vector<16x8xf32>
    %c0_20 = arith.constant 0 : index
    %c0_21 = arith.constant 0 : index
    %23 = vector.load %arg10[%c0_20, %c0_21] : memref<1x8xf32, #tpu.memory_space<vmem>>, vector<1x8xf32>
    %c0_22 = arith.constant 0 : index
    %c0_23 = arith.constant 0 : index
    %24 = vector.load %arg11[%c0_22, %c0_23] : memref<1x8xf32, #tpu.memory_space<vmem>>, vector<1x8xf32>
    %25 = vector.broadcast %23 : vector<1x8xf32> to vector<16x8xf32>
    %26 = arith.subf %25, %22 : vector<16x8xf32>
    %cst_24 = arith.constant 0.000000e+00 : f32
    %27 = vector.broadcast %cst_24 : f32 to vector<16x8xf32>
    %28 = arith.maximumf %26, %27 : vector<16x8xf32>
    %29 = math.absf %26 : vector<16x8xf32>
    %cst_25 = arith.constant 0.000000e+00 : f32
    %30 = vector.broadcast %cst_25 : f32 to vector<16x8xf32>
    %31 = arith.subf %30, %29 : vector<16x8xf32>
    %32 = math.exp %31 : vector<16x8xf32>
    %33 = math.log1p %32 : vector<16x8xf32>
    %34 = arith.addf %28, %33 : vector<16x8xf32>
    %35 = vector.broadcast %23 : vector<1x8xf32> to vector<16x8xf32>
    %36 = arith.subf %35, %34 : vector<16x8xf32>
    %37 = vector.broadcast %24 : vector<1x8xf32> to vector<16x8xf32>
    %38 = arith.subf %36, %37 : vector<16x8xf32>
    %cst_26 = arith.constant 0.000000e+00 : f32
    %39 = vector.broadcast %cst_26 : f32 to vector<16x8xf32>
    %40 = arith.maximumf %38, %39 : vector<16x8xf32>
    %41 = math.absf %38 : vector<16x8xf32>
    %cst_27 = arith.constant 0.000000e+00 : f32
    %42 = vector.broadcast %cst_27 : f32 to vector<16x8xf32>
    %43 = arith.subf %42, %41 : vector<16x8xf32>
    %44 = math.exp %43 : vector<16x8xf32>
    %45 = math.log1p %44 : vector<16x8xf32>
    %46 = arith.addf %40, %45 : vector<16x8xf32>
    %47 = vector.broadcast %24 : vector<1x8xf32> to vector<16x8xf32>
    %48 = arith.addf %47, %46 : vector<16x8xf32>
    %cst_28 = arith.constant 5.000000e-01 : f32
    %49 = vector.broadcast %cst_28 : f32 to vector<16x8xf32>
    %50 = arith.mulf %49, %48 : vector<16x8xf32>
    %51 = math.exp %50 : vector<16x8xf32>
    %52 = tpu.concatenate %17, %51 in 1 : vector<16x8xf32>, vector<16x8xf32> -> vector<16x16xf32>
    %c0_29 = arith.constant 0 : index
    %c0_30 = arith.constant 0 : index
    %53 = vector.load %arg12[%c0_29, %c0_30] : memref<16x16xf32, #tpu.memory_space<vmem>>, vector<16x16xf32>
    tpu.vector_store %arg12[%c0_29, %c0_30], %52 {strides = array<i32>} : memref<16x16xf32, #tpu.memory_space<vmem>>, vector<16x16xf32>,
    return
  }
  func.func @transform_0(%arg0: i32) -> (i32, i32) {
    %c0_i32 = arith.constant 0 : i32
    %c0_i32_0 = arith.constant 0 : i32
    return %arg0, %c0_i32 : i32, i32
  }
  func.func @transform_1(%arg0: i32) -> (i32, i32) {
    %c0_i32 = arith.constant 0 : i32
    %c0_i32_0 = arith.constant 0 : i32
    %c0_i32_1 = arith.constant 0 : i32
    return %c0_i32, %c0_i32_0 : i32, i32
  }
  func.func @transform_2(%arg0: i32) -> (i32, i32) {
    %c0_i32 = arith.constant 0 : i32
    %c0_i32_0 = arith.constant 0 : i32
    %c0_i32_1 = arith.constant 0 : i32
    return %c0_i32, %c0_i32_0 : i32, i32
  }
  func.func @transform_3(%arg0: i32) -> (i32, i32) {
    %c0_i32 = arith.constant 0 : i32
    %c0_i32_0 = arith.constant 0 : i32
    %c0_i32_1 = arith.constant 0 : i32
    return %c0_i32, %c0_i32_0 : i32, i32
  }
  func.func @transform_4(%arg0: i32) -> (i32, i32) {
    %c0_i32 = arith.constant 0 : i32
    %c0_i32_0 = arith.constant 0 : i32
    %c0_i32_1 = arith.constant 0 : i32
    return %c0_i32, %c0_i32_0 : i32, i32
  }
  func.func @transform_5(%arg0: i32) -> (i32, i32) {
    %c0_i32 = arith.constant 0 : i32
    %c0_i32_0 = arith.constant 0 : i32
    %c0_i32_1 = arith.constant 0 : i32
    return %c0_i32, %c0_i32_0 : i32, i32
  }
  func.func @transform_6(%arg0: i32) -> (i32, i32) {
    %c0_i32 = arith.constant 0 : i32
    %c0_i32_0 = arith.constant 0 : i32
    %c0_i32_1 = arith.constant 0 : i32
    return %c0_i32, %c0_i32_0 : i32, i32
  }
  func.func @transform_7(%arg0: i32) -> (i32, i32) {
    %c0_i32 = arith.constant 0 : i32
    %c0_i32_0 = arith.constant 0 : i32
    %c0_i32_1 = arith.constant 0 : i32
    return %c0_i32, %c0_i32_0 : i32, i32
  }
  func.func @transform_8(%arg0: i32) -> (i32, i32) {
    %c0_i32 = arith.constant 0 : i32
    %c0_i32_0 = arith.constant 0 : i32
    %c0_i32_1 = arith.constant 0 : i32
    return %c0_i32, %c0_i32_0 : i32, i32
  }
  func.func @transform_9(%arg0: i32) -> (i32, i32) {
    %c0_i32 = arith.constant 0 : i32
    %c0_i32_0 = arith.constant 0 : i32
    %c0_i32_1 = arith.constant 0 : i32
    return %c0_i32, %c0_i32_0 : i32, i32
  }
  func.func @transform_10(%arg0: i32) -> (i32, i32) {
    %c0_i32 = arith.constant 0 : i32
    %c0_i32_0 = arith.constant 0 : i32
    %c0_i32_1 = arith.constant 0 : i32
    return %c0_i32, %c0_i32_0 : i32, i32
  }
  func.func @transform_11(%arg0: i32) -> (i32, i32) {
    %c0_i32 = arith.constant 0 : i32
    %c0_i32_0 = arith.constant 0 : i32
    return %arg0, %c0_i32 : i32, i32
  }
}

</mosaic_0001>

<llo_original>
// kernel: tpu_custom_call.1
$region0: #{tpu_custom_call.1}
  #allocation0 [shape = 'u32[]', space=smem, size = 0x4, offset = 0x4, fixed_abs, tag = 'smem constant byte address 0x4 - core index']
  #allocation1 [shape = 'u32[144,128]{1,0:T(1,128)}', space=vmem, size = 0x12000, scoped, tag = 'internal scratch']
  %s0 = inlined_call_operand.vmem [shape: f32[50,16], index: 0, kind: input, shape index: {}]
  %s1 = inlined_call_operand.vmem [shape: f32[16,32], index: 1, kind: input, shape index: {}]
  %s2 = inlined_call_operand.vmem [shape: f32[1,32], index: 2, kind: input, shape index: {}]
  %s3 = inlined_call_operand.vmem [shape: f32[32,32], index: 3, kind: input, shape index: {}]
  %s4 = inlined_call_operand.vmem [shape: f32[1,32], index: 4, kind: input, shape index: {}]
  %s5 = inlined_call_operand.vmem [shape: f32[32,8], index: 5, kind: input, shape index: {}]
  %s6 = inlined_call_operand.vmem [shape: f32[1,8], index: 6, kind: input, shape index: {}]
  %s7 = inlined_call_operand.vmem [shape: f32[32,8], index: 7, kind: input, shape index: {}]
  %s8 = inlined_call_operand.vmem [shape: f32[1,8], index: 8, kind: input, shape index: {}]
  %s9 = inlined_call_operand.vmem [shape: f32[1,8], index: 9, kind: input, shape index: {}]
  %s10 = inlined_call_operand.vmem [shape: f32[1,8], index: 10, kind: input, shape index: {}]
  %s11 = inlined_call_operand.vmem [shape: f32[50,16], index: 11, kind: output, shape index: {}]
  %s12 = sld [smem:[#allocation0]]
  $region125: #{tpu_custom_call.1} parent=0
    _
  %s14 = ssub.s32 1, %s12
  %s15 = scalar_select 0, %s14, %s12
  $region1: #{tpu_custom_call.1} parent=0
    #allocation2 [shape = 'u8[16384]{0}', space=vmem, size = 0x4000, scoped, tag = 'output window, operand 0']
    loop: start=0, step=1, limit=6
    $region2: #{tpu_custom_call.1} parent=1 // loop_pre_header
      _
    $region3: #{tpu_custom_call.1} parent=1 // loop_header
      %s17 = sphi 0, %s21
      %p18 = scmp.ge.s32.totalorder %s17, 6
      %s27 = sphi 0, %s29
      %s30 = sphi 0, %s27
      %s31 = sphi 0, %s30
      %s47 = sphi 0, %s31
      %s51 = sphi 0, %s51
      %s53 = sphi 0, %s51
      %s54 = sphi 0, %s53
      %s68 = sphi 0, %s54
      %s72 = sphi 0, %s72
      %s74 = sphi 0, %s72
      %s75 = sphi 0, %s74
      %s89 = sphi 0, %s75
      %s93 = sphi 0, %s93
      %s95 = sphi 0, %s93
      %s96 = sphi 0, %s95
      %s110 = sphi 0, %s96
      %s114 = sphi 0, %s114
      %s116 = sphi 0, %s114
      %s117 = sphi 0, %s116
      %s131 = sphi 0, %s117
      %s135 = sphi 0, %s135
      %s137 = sphi 0, %s135
      %s138 = sphi 0, %s137
      %s152 = sphi 0, %s138
      %s156 = sphi 0, %s156
      %s158 = sphi 0, %s156
      %s159 = sphi 0, %s158
      %s173 = sphi 0, %s159
      %s177 = sphi 0, %s177
      %s179 = sphi 0, %s177
      %s180 = sphi 0, %s179
      %s194 = sphi 0, %s180
      %s198 = sphi 0, %s198
      %s200 = sphi 0, %s198
      %s201 = sphi 0, %s200
      %s215 = sphi 0, %s201
      %s219 = sphi 0, %s219
      %s221 = sphi 0, %s219
      %s222 = sphi 0, %s221
      %s236 = sphi 0, %s222
      %s240 = sphi 0, %s240
      %s242 = sphi 0, %s240
      %s243 = sphi 0, %s242
      %s257 = sphi 0, %s243
      %s263 = sphi 0, %s265
      %s266 = sphi 0, %s263
      %s267 = sphi 0, %s266
      %s283 = sphi 0, %s267
    $region4: #{tpu_custom_call.1} parent=1 // loop_header_branch
      %20 = sbr.rel (%p18) target = $region8
    $region5: #{tpu_custom_call.1} parent=1 // loop_body
      %s22 = ssub.s32 %s17, 1
      %s23 = ssub.s32 %s17, 2
      %s24 = sadd.s32 %s17, 1
      %s25 = ssub.s32 %s17, %s24
      %p26 = scmp.eq.s32.totalorder %s25, 0
      %s28 = sadd.s32 %s27, 1
      %s29 = scalar_select %p26, %s27, %s28
      %p32 = pneg %p26
      %p33 = scmp.eq.s32.totalorder %s17, 3
      %p34 = por %p32, %p33
      %p35 = scmp.ne.s32.totalorder %s27, %s30
      %p36 = scmp.eq.s32.totalorder %s17, 0
      %p37 = por %p35, %p36
      %p38 = scmp.ne.s32.totalorder %s27, %s30
      %p39 = scmp.eq.s32.totalorder %s22, 3
      %p40 = por %p38, %p39
      %p41 = scmp.ne.s32.totalorder %s30, %s31
      %p42 = scmp.eq.s32.totalorder %s22, 0
      %p43 = por %p41, %p42
      %p44 = scmp.ne.s32.totalorder %s30, %s31
      %p45 = scmp.eq.s32.totalorder %s23, 3
      %p46 = por %p44, %p45
      %p48 = scmp.ne.s32.totalorder %s31, %s47
      %p49 = scmp.eq.s32.totalorder %s23, 0
      %p50 = por %p48, %p49
      %s52 = sadd.s32 %s51, 1
      %p55 = scmp.eq.s32.totalorder %s17, 3
      %p56 = scmp.ne.s32.totalorder %s51, %s53
      %p57 = scmp.eq.s32.totalorder %s17, 0
      %p58 = por %p56, %p57
      %p59 = scmp.ne.s32.totalorder %s51, %s53
      %p60 = scmp.eq.s32.totalorder %s22, 3
      %p61 = por %p59, %p60
      %p62 = scmp.ne.s32.totalorder %s53, %s54
      %p63 = scmp.eq.s32.totalorder %s22, 0
      %p64 = por %p62, %p63
      %p65 = scmp.ne.s32.totalorder %s53, %s54
      %p66 = scmp.eq.s32.totalorder %s23, 3
      %p67 = por %p65, %p66
      %p69 = scmp.ne.s32.totalorder %s54, %s68
      %p70 = scmp.eq.s32.totalorder %s23, 0
      %p71 = por %p69, %p70
      %s73 = sadd.s32 %s72, 1
      %p76 = scmp.eq.s32.totalorder %s17, 3
      %p77 = scmp.ne.s32.totalorder %s72, %s74
      %p78 = scmp.eq.s32.totalorder %s17, 0
      %p79 = por %p77, %p78
      %p80 = scmp.ne.s32.totalorder %s72, %s74
      %p81 = scmp.eq.s32.totalorder %s22, 3
      %p82 = por %p80, %p81
      %p83 = scmp.ne.s32.totalorder %s74, %s75
      %p84 = scmp.eq.s32.totalorder %s22, 0
      %p85 = por %p83, %p84
      %p86 = scmp.ne.s32.totalorder %s74, %s75
      %p87 = scmp.eq.s32.totalorder %s23, 3
      %p88 = por %p86, %p87
      %p90 = scmp.ne.s32.totalorder %s75, %s89
      %p91 = scmp.eq.s32.totalorder %s23, 0
      %p92 = por %p90, %p91
      %s94 = sadd.s32 %s93, 1
      %p97 = scmp.eq.s32.totalorder %s17, 3
      %p98 = scmp.ne.s32.totalorder %s93, %s95
      %p99 = scmp.eq.s32.totalorder %s17, 0
      %p100 = por %p98, %p99
      %p101 = scmp.ne.s32.totalorder %s93, %s95
      %p102 = scmp.eq.s32.totalorder %s22, 3
      %p103 = por %p101, %p102
      %p104 = scmp.ne.s32.totalorder %s95, %s96
      %p105 = scmp.eq.s32.totalorder %s22, 0
      %p106 = por %p104, %p105
      %p107 = scmp.ne.s32.totalorder %s95, %s96
      %p108 = scmp.eq.s32.totalorder %s23, 3
      %p109 = por %p107, %p108
      %p111 = scmp.ne.s32.totalorder %s96, %s110
      %p112 = scmp.eq.s32.totalorder %s23, 0
      %p113 = por %p111, %p112
      %s115 = sadd.s32 %s114, 1
      %p118 = scmp.eq.s32.totalorder %s17, 3
      %p119 = scmp.ne.s32.totalorder %s114, %s116
      %p120 = scmp.eq.s32.totalorder %s17, 0
      %p121 = por %p119, %p120
      %p122 = scmp.ne.s32.totalorder %s114, %s116
      %p123 = scmp.eq.s32.totalorder %s22, 3
      %p124 = por %p122, %p123
      %p125 = scmp.ne.s32.totalorder %s116, %s117
      %p126 = scmp.eq.s32.totalorder %s22, 0
      %p127 = por %p125, %p126
      %p128 = scmp.ne.s32.totalorder %s116, %s117
      %p129 = scmp.eq.s32.totalorder %s23, 3
      %p130 = por %p128, %p129
      %p132 = scmp.ne.s32.totalorder %s117, %s131
      %p133 = scmp.eq.s32.totalorder %s23, 0
      %p134 = por %p132, %p133
      %s136 = sadd.s32 %s135, 1
      %p139 = scmp.eq.s32.totalorder %s17, 3
      %p140 = scmp.ne.s32.totalorder %s135, %s137
      %p141 = scmp.eq.s32.totalorder %s17, 0
      %p142 = por %p140, %p141
      %p143 = scmp.ne.s32.totalorder %s135, %s137
      %p144 = scmp.eq.s32.totalorder %s22, 3
      %p145 = por %p143, %p144
      %p146 = scmp.ne.s32.totalorder %s137, %s138
      %p147 = scmp.eq.s32.totalorder %s22, 0
      %p148 = por %p146, %p147
      %p149 = scmp.ne.s32.totalorder %s137, %s138
      %p150 = scmp.eq.s32.totalorder %s23, 3
      %p151 = por %p149, %p150
      %p153 = scmp.ne.s32.totalorder %s138, %s152
      %p154 = scmp.eq.s32.totalorder %s23, 0
      %p155 = por %p153, %p154
      %s157 = sadd.s32 %s156, 1
      %p160 = scmp.eq.s32.totalorder %s17, 3
      %p161 = scmp.ne.s32.totalorder %s156, %s158
      %p162 = scmp.eq.s32.totalorder %s17, 0
      %p163 = por %p161, %p162
      %p164 = scmp.ne.s32.totalorder %s156, %s158
      %p165 = scmp.eq.s32.totalorder %s22, 3
      %p166 = por %p164, %p165
      %p167 = scmp.ne.s32.totalorder %s158, %s159
      %p168 = scmp.eq.s32.totalorder %s22, 0
      %p169 = por %p167, %p168
      %p170 = scmp.ne.s32.totalorder %s158, %s159
      %p171 = scmp.eq.s32.totalorder %s23, 3
      %p172 = por %p170, %p171
      %p174 = scmp.ne.s32.totalorder %s159, %s173
      %p175 = scmp.eq.s32.totalorder %s23, 0
      %p176 = por %p174, %p175
      %s178 = sadd.s32 %s177, 1
      %p181 = scmp.eq.s32.totalorder %s17, 3
      %p182 = scmp.ne.s32.totalorder %s177, %s179
      %p183 = scmp.eq.s32.totalorder %s17, 0
      %p184 = por %p182, %p183
      %p185 = scmp.ne.s32.totalorder %s177, %s179
      %p186 = scmp.eq.s32.totalorder %s22, 3
      %p187 = por %p185, %p186
      %p188 = scmp.ne.s32.totalorder %s179, %s180
      %p189 = scmp.eq.s32.totalorder %s22, 0
      %p190 = por %p188, %p189
      %p191 = scmp.ne.s32.totalorder %s179, %s180
      %p192 = scmp.eq.s32.totalorder %s23, 3
      %p193 = por %p191, %p192
      %p195 = scmp.ne.s32.totalorder %s180, %s194
      %p196 = scmp.eq.s32.totalorder %s23, 0
      %p197 = por %p195, %p196
      %s199 = sadd.s32 %s198, 1
      %p202 = scmp.eq.s32.totalorder %s17, 3
      %p203 = scmp.ne.s32.totalorder %s198, %s200
      %p204 = scmp.eq.s32.totalorder %s17, 0
      %p205 = por %p203, %p204
      %p206 = scmp.ne.s32.totalorder %s198, %s200
      %p207 = scmp.eq.s32.totalorder %s22, 3
      %p208 = por %p206, %p207
      %p209 = scmp.ne.s32.totalorder %s200, %s201
      %p210 = scmp.eq.s32.totalorder %s22, 0
      %p211 = por %p209, %p210
      %p212 = scmp.ne.s32.totalorder %s200, %s201
      %p213 = scmp.eq.s32.totalorder %s23, 3
      %p214 = por %p212, %p213
      %p216 = scmp.ne.s32.totalorder %s201, %s215
      %p217 = scmp.eq.s32.totalorder %s23, 0
      %p218 = por %p216, %p217
      %s220 = sadd.s32 %s219, 1
      %p223 = scmp.eq.s32.totalorder %s17, 3
      %p224 = scmp.ne.s32.totalorder %s219, %s221
      %p225 = scmp.eq.s32.totalorder %s17, 0
      %p226 = por %p224, %p225
      %p227 = scmp.ne.s32.totalorder %s219, %s221
      %p228 = scmp.eq.s32.totalorder %s22, 3
      %p229 = por %p227, %p228
      %p230 = scmp.ne.s32.totalorder %s221, %s222
      %p231 = scmp.eq.s32.totalorder %s22, 0
      %p232 = por %p230, %p231
      %p233 = scmp.ne.s32.totalorder %s221, %s222
      %p234 = scmp.eq.s32.totalorder %s23, 3
      %p235 = por %p233, %p234
      %p237 = scmp.ne.s32.totalorder %s222, %s236
      %p238 = scmp.eq.s32.totalorder %s23, 0
      %p239 = por %p237, %p238
      %s241 = sadd.s32 %s240, 1
      %p244 = scmp.eq.s32.totalorder %s17, 3
      %p245 = scmp.ne.s32.totalorder %s240, %s242
      %p246 = scmp.eq.s32.totalorder %s17, 0
      %p247 = por %p245, %p246
      %p248 = scmp.ne.s32.totalorder %s240, %s242
      %p249 = scmp.eq.s32.totalorder %s22, 3
      %p250 = por %p248, %p249
      %p251 = scmp.ne.s32.totalorder %s242, %s243
      %p252 = scmp.eq.s32.totalorder %s22, 0
      %p253 = por %p251, %p252
      %p254 = scmp.ne.s32.totalorder %s242, %s243
      %p255 = scmp.eq.s32.totalorder %s23, 3
      %p256 = por %p254, %p255
      %p258 = scmp.ne.s32.totalorder %s243, %s257
      %p259 = scmp.eq.s32.totalorder %s23, 0
      %p260 = por %p258, %p259
      %s261 = ssub.s32 %s17, %s24
      %p262 = scmp.eq.s32.totalorder %s261, 0
      %s264 = sadd.s32 %s263, 1
      %s265 = scalar_select %p262, %s263, %s264
      %p268 = pneg %p262
      %p269 = scmp.eq.s32.totalorder %s17, 3
      %p270 = por %p268, %p269
      %p271 = scmp.ne.s32.totalorder %s263, %s266
      %p272 = scmp.eq.s32.totalorder %s17, 0
      %p273 = por %p271, %p272
      %p274 = scmp.ne.s32.totalorder %s263, %s266
      %p275 = scmp.eq.s32.totalorder %s22, 3
      %p276 = por %p274, %p275
      %p277 = scmp.ne.s32.totalorder %s266, %s267
      %p278 = scmp.eq.s32.totalorder %s22, 0
      %p279 = por %p277, %p278
      %p280 = scmp.ne.s32.totalorder %s266, %s267
      %p281 = scmp.eq.s32.totalorder %s23, 3
      %p282 = por %p280, %p281
      %p284 = scmp.ne.s32.totalorder %s267, %s283
      %p285 = scmp.eq.s32.totalorder %s23, 0
      %p286 = por %p284, %p285
      %p287 = scmp.le.s32.totalorder 1, %s17
      %p288 = scmp.lt.s32.totalorder %s17, 5
      %p289 = pnand %p287, %p288
      %p290 = pneg %p289
      // Predicated region
      $region9: #{tpu_custom_call.1} parent=5 // pred_check
        _
      $region10: #{tpu_custom_call.1} parent=5 // pred_check_branch
        %292 = sbr.rel (%p289) target = $region12
      $region11: #{tpu_custom_call.1} parent=5 // pred_region
        %s293 = ssub.s32 %s17, 1
        // Predicated region
        $region13: #{tpu_custom_call.1} parent=11 // pred_check
          %p294 = pneg %p64
        $region14: #{tpu_custom_call.1} parent=11 // pred_check_branch
          %296 = sbr.rel (%p294) target = $region16
        $region15: #{tpu_custom_call.1} parent=11 // pred_region
          _
        $region16: #{tpu_custom_call.1} parent=11 // pred_fallthru
          _
        // Predicated region
        $region17: #{tpu_custom_call.1} parent=11 // pred_check
          %p297 = pneg %p85
        $region18: #{tpu_custom_call.1} parent=11 // pred_check_branch
          %299 = sbr.rel (%p297) target = $region20
        $region19: #{tpu_custom_call.1} parent=11 // pred_region
          _
        $region20: #{tpu_custom_call.1} parent=11 // pred_fallthru
          _
        // Predicated region
        $region21: #{tpu_custom_call.1} parent=11 // pred_check
          %p300 = pneg %p106
        $region22: #{tpu_custom_call.1} parent=11 // pred_check_branch
          %302 = sbr.rel (%p300) target = $region24
        $region23: #{tpu_custom_call.1} parent=11 // pred_region
          _
        $region24: #{tpu_custom_call.1} parent=11 // pred_fallthru
          _
        // Predicated region
        $region25: #{tpu_custom_call.1} parent=11 // pred_check
          %p303 = pneg %p127
        $region26: #{tpu_custom_call.1} parent=11 // pred_check_branch
          %305 = sbr.rel (%p303) target = $region28
        $region27: #{tpu_custom_call.1} parent=11 // pred_region
          _
        $region28: #{tpu_custom_call.1} parent=11 // pred_fallthru
          _
        // Predicated region
        $region29: #{tpu_custom_call.1} parent=11 // pred_check
          %p306 = pneg %p148
        $region30: #{tpu_custom_call.1} parent=11 // pred_check_branch
          %308 = sbr.rel (%p306) target = $region32
        $region31: #{tpu_custom_call.1} parent=11 // pred_region
          _
        $region32: #{tpu_custom_call.1} parent=11 // pred_fallthru
          _
        // Predicated region
        $region33: #{tpu_custom_call.1} parent=11 // pred_check
          %p309 = pneg %p169
        $region34: #{tpu_custom_call.1} parent=11 // pred_check_branch
          %311 = sbr.rel (%p309) target = $region36
        $region35: #{tpu_custom_call.1} parent=11 // pred_region
          _
        $region36: #{tpu_custom_call.1} parent=11 // pred_fallthru
          _
        // Predicated region
        $region37: #{tpu_custom_call.1} parent=11 // pred_check
          %p312 = pneg %p190
        $region38: #{tpu_custom_call.1} parent=11 // pred_check_branch
          %314 = sbr.rel (%p312) target = $region40
        $region39: #{tpu_custom_call.1} parent=11 // pred_region
          _
        $region40: #{tpu_custom_call.1} parent=11 // pred_fallthru
          _
        // Predicated region
        $region41: #{tpu_custom_call.1} parent=11 // pred_check
          %p315 = pneg %p211
        $region42: #{tpu_custom_call.1} parent=11 // pred_check_branch
          %317 = sbr.rel (%p315) target = $region44
        $region43: #{tpu_custom_call.1} parent=11 // pred_region
          _
        $region44: #{tpu_custom_call.1} parent=11 // pred_fallthru
          _
        // Predicated region
        $region45: #{tpu_custom_call.1} parent=11 // pred_check
          %p318 = pneg %p232
        $region46: #{tpu_custom_call.1} parent=11 // pred_check_branch
          %320 = sbr.rel (%p318) target = $region48
        $region47: #{tpu_custom_call.1} parent=11 // pred_region
          _
        $region48: #{tpu_custom_call.1} parent=11 // pred_fallthru
          _
        // Predicated region
        $region49: #{tpu_custom_call.1} parent=11 // pred_check
          %p321 = pneg %p253
        $region50: #{tpu_custom_call.1} parent=11 // pred_check_branch
          %323 = sbr.rel (%p321) target = $region52
        $region51: #{tpu_custom_call.1} parent=11 // pred_region
          _
        $region52: #{tpu_custom_call.1} parent=11 // pred_fallthru
          _
      $region12: #{tpu_custom_call.1} parent=5 // pred_fallthru
        _
      %p324 = scmp.lt.s32.totalorder %s17, 4
      // Predicated region
      $region53: #{tpu_custom_call.1} parent=5 // pred_check
        %p325 = pneg %p324
      $region54: #{tpu_custom_call.1} parent=5 // pred_check_branch
        %327 = sbr.rel (%p325) target = $region56
      $region55: #{tpu_custom_call.1} parent=5 // pred_region
        // Predicated region
        $region57: #{tpu_custom_call.1} parent=55 // pred_check
          %p328 = pneg %p37
        $region58: #{tpu_custom_call.1} parent=55 // pred_check_branch
          %330 = sbr.rel (%p328) target = $region60
        $region59: #{tpu_custom_call.1} parent=55 // pred_region
          %s331 = smul.u32 2, %s17
          %s332 = ssub.s32 7, %s331
          %p333 = scmp.lt.s32.totalorder %s332, 2
          %s334 = scalar_select %p333, %s332, 2
          %s335 = smul.u32 128, %s334
          %p336 = scmp.lt.s32.totalorder %s331, 6
          %s337 = scalar_select %p336, %s331, 6
          %s338 = smul.addr %s337, 8
          %s339 = scalar_lea.vmem %s0, %s338
          %s340 = smul.u32 2, %s17
          %s341 = ssub.s32 7, %s340
          %p342 = scmp.lt.s32.totalorder %s341, 2
          %s343 = scalar_select %p342, %s341, 2
          %s344 = smul.u32 128, %s343
        $region60: #{tpu_custom_call.1} parent=55 // pred_fallthru
          _
      $region56: #{tpu_custom_call.1} parent=5 // pred_fallthru
        _
      %p345 = scmp.le.s32.totalorder 1, %s17
      %p346 = scmp.lt.s32.totalorder %s17, 5
      %p347 = pnand %p345, %p346
      %p348 = pneg %p347
      // Predicated region
      $region61: #{tpu_custom_call.1} parent=5 // pred_check
        _
      $region62: #{tpu_custom_call.1} parent=5 // pred_check_branch
        %350 = sbr.rel (%p347) target = $region64
      $region63: #{tpu_custom_call.1} parent=5 // pred_region
        %s351 = ssub.s32 %s17, 1
        %s352 = smul.u32 2, %s22
        %s353 = ssub.s32 7, %s352
        %p354 = scmp.lt.s32.totalorder %s353, 2
        %s355 = scalar_select %p354, %s353, 2
        %s356 = smul.u32 128, %s355
        %p357 = scmp.lt.s32.totalorder %s352, 6
        %s358 = scalar_select %p357, %s352, 6
        %s359 = smul.addr %s358, 8
        %s360 = scalar_lea.vmem %s0, %s359
        %p361 = pneg %p43
        %p362 = pneg %p40
        %p363 = pneg %p64
        %p364 = pneg %p61
        %p365 = pneg %p85
        %p366 = pneg %p82
        %p367 = pneg %p106
        %p368 = pneg %p103
        %p369 = pneg %p127
        %p370 = pneg %p124
        %p371 = pneg %p148
        %p372 = pneg %p145
        %p373 = pneg %p169
        %p374 = pneg %p166
        %p375 = pneg %p190
        %p376 = pneg %p187
        %p377 = pneg %p211
        %p378 = pneg %p208
        %p379 = pneg %p232
        %p380 = pneg %p229
        %p381 = pneg %p253
        %p382 = pneg %p250
        %p383 = pneg %p279
        %p384 = pneg %p276
        %s385 = sand.u32 %s266, 1
        %s386 = sand.u32 %s266, 1
        %s387 = smul.addr %s386, 16
        %s388 = scalar_lea.vmem [#allocation2], %s387
        %s389 = smul.u32 2, %s22
        %s390 = ssub.s32 7, %s389
        %p391 = scmp.lt.s32.totalorder %s390, 2
        %s392 = scalar_select %p391, %s390, 2
        %s393 = smul.u32 128, %s392
        %p394 = scmp.lt.s32.totalorder %s389, 6
        %s395 = scalar_select %p394, %s389, 6
        %s396 = smul.addr %s395, 8
        %s397 = scalar_lea.vmem %s0, %s396
        %s398 = smul.u32 2, %s22
        %s399 = ssub.s32 7, %s398
        %p400 = scmp.lt.s32.totalorder %s399, 2
        %s401 = scalar_select %p400, %s399, 2
        %s402 = smul.u32 128, %s401
        %s403 = smul.u32 2, %s22
        %s404 = ssub.s32 7, %s403
        %p405 = scmp.lt.s32.totalorder %s404, 2
        %s406 = scalar_select %p405, %s404, 2
        %s407 = smul.u32 128, %s406
        %v408 = vld [vmem:[%s397] sm:$0xff]
        %v409 = vld [vmem:[%s397 + $0x8] sm:$0xff]
        %v410 = vld [vmem:[%s1] sm:$0xff]
        %v411 = vld [vmem:[%s1 + $0x8] sm:$0xff]
        %v412 = vld [vmem:[%s2] sm:$0x1]
        %v414 = vlaneseq
        %v415 = vshrl.u32 %v414, 7
        %v416 = vsub.s32 0, %v415
        %v417 = vrot.slane %v412, %v416
        %vm419 = vcmask 130048
        %v421 = vsel %vm419, %v408, 0
        %v424 = vsel %vm419, %v409, 0
        %426 = vmatprep.subr.mxu0 0.0
        %427 = vmatpush1.msra.mxu0 %v410
        %428 = vmatprep.subr.mxu0 0.0
        %429 = vmatpush1.msra.mxu0 %v411
        %430 = vmatprep.subr.mxu0 0.0
        %431 = vmatpush1.msra.mxu0 0.0
        %432 = vmatprep.subr.mxu0 0.0
        %433 = vmatpush1.msra.mxu0 0.0
        %434 = vmatprep.subr.mxu0 0.0
        %435 = vmatpush1.msra.mxu0 0.0
        %436 = vmatprep.subr.mxu0 0.0
        %437 = vmatpush1.msra.mxu0 0.0
        %438 = vmatprep.subr.mxu0 0.0
        %439 = vmatpush1.msra.mxu0 0.0
        %440 = vmatprep.subr.mxu0 0.0
        %441 = vmatpush1.msra.mxu0 0.0
        %442 = vmatprep.subr.mxu0 0.0
        %443 = vmatpush1.msra.mxu0 0.0
        %444 = vmatprep.subr.mxu0 0.0
        %445 = vmatpush1.msra.mxu0 0.0
        %446 = vmatprep.subr.mxu0 0.0
        %447 = vmatpush1.msra.mxu0 0.0
        %448 = vmatprep.subr.mxu0 0.0
        %449 = vmatpush1.msra.mxu0 0.0
        %450 = vmatprep.subr.mxu0 0.0
        %451 = vmatpush1.msra.mxu0 0.0
        %452 = vmatprep.subr.mxu0 0.0
        %453 = vmatpush1.msra.mxu0 0.0
        %454 = vmatprep.subr.mxu0 0.0
        %455 = vmatpush1.msra.mxu0 0.0
        %456 = vmatprep.subr.mxu0 0.0
        %457 = vmatpush1.msra.mxu0 0.0
        %458 = vmatprep.subr.mxu0 0.0
        %459 = vmatpush1.msra.mxu0 0.0
        %460 = vmatprep.subr.mxu0 0.0
        %461 = vmatpush1.msra.mxu0 0.0
        %462 = vmatprep.subr.mxu0 0.0
        %463 = vmatpush1.msra.mxu0 0.0
        %464 = vmatprep.subr.mxu0 0.0
        %465 = vmatpush1.msra.mxu0 0.0
        %466 = vmatprep.subr.mxu0 0.0
        %467 = vmatpush1.msra.mxu0 0.0
        %468 = vmatprep.subr.mxu0 0.0
        %469 = vmatpush1.msra.mxu0 0.0
        %470 = vmatprep.subr.mxu0 0.0
        %471 = vmatpush1.msra.mxu0 0.0
        %472 = vmatprep.subr.mxu0 0.0
        %473 = vmatpush1.msra.mxu0 0.0
        %474 = vmatprep.subr.mxu0 0.0
        %475 = vmatpush1.msra.mxu0 0.0
        %476 = vmatprep.subr.mxu0 0.0
        %477 = vmatpush1.msra.mxu0 0.0
        %478 = vmatprep.subr.mxu0 0.0
        %479 = vmatpush1.msra.mxu0 0.0
        %480 = vmatprep.subr.mxu0 0.0
        %481 = vmatpush1.msra.mxu0 0.0
        %482 = vmatprep.subr.mxu0 0.0
        %483 = vmatpush1.msra.mxu0 0.0
        %484 = vmatprep.subr.mxu0 0.0
        %485 = vmatpush1.msra.mxu0 0.0
        %486 = vmatprep.subr.mxu0 0.0
        %487 = vmatpush1.msra.mxu0 0.0
        %488 = vmatprep.subr.mxu0 0.0
        %489 = vmatpush1.msra.mxu0 0.0
        %490 = vmatprep.mubr.f32.mxu0 0.0
        %491 = vmatmul.mubr.f32.gmra.mrb[0].mxu0 %v421
        %v492 = vpop.f32.mrb[0].mxu0
        %v493 = vadd.f32 %v417, %v492
        %v494 = vpop.f32.mrb[0].mxu0
        %495 = vmatprep.mubr.f32.mxu0 0.0
        %496 = vmatmul.mubr.f32.gmra.mrb[0].mxu0 %v424
        %v497 = vpop.f32.mrb[0].mxu0
        %v498 = vadd.f32 %v417, %v497
        %v499 = vpop.f32.mrb[0].mxu0
        %500 = vdwg.mxu0
        %v501 = vtanh.pop %v493
        %v502 = vtanh.pop %v498
        %v503 = vld [vmem:[%s3] sm:$0xff]
        %v504 = vld [vmem:[%s3 + $0x8] sm:$0xff]
        %v505 = vld [vmem:[%s3 + $0x10] sm:$0xff]
        %v506 = vld [vmem:[%s3 + $0x18] sm:$0xff]
        %v507 = vld [vmem:[%s4] sm:$0x1]
        %v509 = vlaneseq
        %v510 = vshrl.u32 %v509, 7
        %v511 = vsub.s32 0, %v510
        %v512 = vrot.slane %v507, %v511
        %vm514 = vcmask 261120
        %v516 = vsel %vm514, %v501, 0
        %v519 = vsel %vm514, %v502, 0
        %521 = vmatprep.subr.mxu0 0.0
        %522 = vmatpush1.msra.mxu0 %v503
        %523 = vmatprep.subr.mxu0 0.0
        %524 = vmatpush1.msra.mxu0 %v504
        %525 = vmatprep.subr.mxu0 0.0
        %526 = vmatpush1.msra.mxu0 %v505
        %527 = vmatprep.subr.mxu0 0.0
        %528 = vmatpush1.msra.mxu0 %v506
        %529 = vmatprep.subr.mxu0 0.0
        %530 = vmatpush1.msra.mxu0 0.0
        %531 = vmatprep.subr.mxu0 0.0
        %532 = vmatpush1.msra.mxu0 0.0
        %533 = vmatprep.subr.mxu0 0.0
        %534 = vmatpush1.msra.mxu0 0.0
        %535 = vmatprep.subr.mxu0 0.0
        %536 = vmatpush1.msra.mxu0 0.0
        %537 = vmatprep.subr.mxu0 0.0
        %538 = vmatpush1.msra.mxu0 0.0
        %539 = vmatprep.subr.mxu0 0.0
        %540 = vmatpush1.msra.mxu0 0.0
        %541 = vmatprep.subr.mxu0 0.0
        %542 = vmatpush1.msra.mxu0 0.0
        %543 = vmatprep.subr.mxu0 0.0
        %544 = vmatpush1.msra.mxu0 0.0
        %545 = vmatprep.subr.mxu0 0.0
        %546 = vmatpush1.msra.mxu0 0.0
        %547 = vmatprep.subr.mxu0 0.0
        %548 = vmatpush1.msra.mxu0 0.0
        %549 = vmatprep.subr.mxu0 0.0
        %550 = vmatpush1.msra.mxu0 0.0
        %551 = vmatprep.subr.mxu0 0.0
        %552 = vmatpush1.msra.mxu0 0.0
        %553 = vmatprep.subr.mxu0 0.0
        %554 = vmatpush1.msra.mxu0 0.0
        %555 = vmatprep.subr.mxu0 0.0
        %556 = vmatpush1.msra.mxu0 0.0
        %557 = vmatprep.subr.mxu0 0.0
        %558 = vmatpush1.msra.mxu0 0.0
        %559 = vmatprep.subr.mxu0 0.0
        %560 = vmatpush1.msra.mxu0 0.0
        %561 = vmatprep.subr.mxu0 0.0
        %562 = vmatpush1.msra.mxu0 0.0
        %563 = vmatprep.subr.mxu0 0.0
        %564 = vmatpush1.msra.mxu0 0.0
        %565 = vmatprep.subr.mxu0 0.0
        %566 = vmatpush1.msra.mxu0 0.0
        %567 = vmatprep.subr.mxu0 0.0
        %568 = vmatpush1.msra.mxu0 0.0
        %569 = vmatprep.subr.mxu0 0.0
        %570 = vmatpush1.msra.mxu0 0.0
        %571 = vmatprep.subr.mxu0 0.0
        %572 = vmatpush1.msra.mxu0 0.0
        %573 = vmatprep.subr.mxu0 0.0
        %574 = vmatpush1.msra.mxu0 0.0
        %575 = vmatprep.subr.mxu0 0.0
        %576 = vmatpush1.msra.mxu0 0.0
        %577 = vmatprep.subr.mxu0 0.0
        %578 = vmatpush1.msra.mxu0 0.0
        %579 = vmatprep.subr.mxu0 0.0
        %580 = vmatpush1.msra.mxu0 0.0
        %581 = vmatprep.subr.mxu0 0.0
        %582 = vmatpush1.msra.mxu0 0.0
        %583 = vmatprep.subr.mxu0 0.0
        %584 = vmatpush1.msra.mxu0 0.0
        %585 = vmatprep.mubr.f32.mxu0 0.0
        %586 = vmatmul.mubr.f32.gmra.mrb[0].mxu0 %v516
        %v587 = vpop.f32.mrb[0].mxu0
        %v588 = vadd.f32 %v512, %v587
        %v589 = vpop.f32.mrb[0].mxu0
        %590 = vmatprep.mubr.f32.mxu0 0.0
        %591 = vmatmul.mubr.f32.gmra.mrb[0].mxu0 %v519
        %v592 = vpop.f32.mrb[0].mxu0
        %v593 = vadd.f32 %v512, %v592
        %v594 = vpop.f32.mrb[0].mxu0
        %595 = vdwg.mxu0
        %v596 = vtanh.pop %v588
        %v597 = vtanh.pop %v593
        %v598 = vld [vmem:[%s5] sm:$0xff]
        %v599 = vld [vmem:[%s5 + $0x8] sm:$0xff]
        %v600 = vld [vmem:[%s5 + $0x10] sm:$0xff]
        %v601 = vld [vmem:[%s5 + $0x18] sm:$0xff]
        %v602 = vld [vmem:[%s6] sm:$0x1]
        %v604 = vlaneseq
        %v605 = vshrl.u32 %v604, 7
        %v606 = vsub.s32 0, %v605
        %v607 = vrot.slane %v602, %v606
        %v610 = vsel %vm514, %v596, 0
        %v613 = vsel %vm514, %v597, 0
        %615 = vmatprep.subr.mxu0 0.0
        %616 = vmatpush1.msra.mxu0 %v598
        %617 = vmatprep.subr.mxu0 0.0
        %618 = vmatpush1.msra.mxu0 %v599
        %619 = vmatprep.subr.mxu0 0.0
        %620 = vmatpush1.msra.mxu0 %v600
        %621 = vmatprep.subr.mxu0 0.0
        %622 = vmatpush1.msra.mxu0 %v601
        %623 = vmatprep.subr.mxu0 0.0
        %624 = vmatpush1.msra.mxu0 0.0
        %625 = vmatprep.subr.mxu0 0.0
        %626 = vmatpush1.msra.mxu0 0.0
        %627 = vmatprep.subr.mxu0 0.0
        %628 = vmatpush1.msra.mxu0 0.0
        %629 = vmatprep.subr.mxu0 0.0
        %630 = vmatpush1.msra.mxu0 0.0
        %631 = vmatprep.subr.mxu0 0.0
        %632 = vmatpush1.msra.mxu0 0.0
        %633 = vmatprep.subr.mxu0 0.0
        %634 = vmatpush1.msra.mxu0 0.0
        %635 = vmatprep.subr.mxu0 0.0
        %636 = vmatpush1.msra.mxu0 0.0
        %637 = vmatprep.subr.mxu0 0.0
        %638 = vmatpush1.msra.mxu0 0.0
        %639 = vmatprep.subr.mxu0 0.0
        %640 = vmatpush1.msra.mxu0 0.0
        %641 = vmatprep.subr.mxu0 0.0
        %642 = vmatpush1.msra.mxu0 0.0
        %643 = vmatprep.subr.mxu0 0.0
        %644 = vmatpush1.msra.mxu0 0.0
        %645 = vmatprep.subr.mxu0 0.0
        %646 = vmatpush1.msra.mxu0 0.0
        %647 = vmatprep.subr.mxu0 0.0
        %648 = vmatpush1.msra.mxu0 0.0
        %649 = vmatprep.subr.mxu0 0.0
        %650 = vmatpush1.msra.mxu0 0.0
        %651 = vmatprep.subr.mxu0 0.0
        %652 = vmatpush1.msra.mxu0 0.0
        %653 = vmatprep.subr.mxu0 0.0
        %654 = vmatpush1.msra.mxu0 0.0
        %655 = vmatprep.subr.mxu0 0.0
        %656 = vmatpush1.msra.mxu0 0.0
        %657 = vmatprep.subr.mxu0 0.0
        %658 = vmatpush1.msra.mxu0 0.0
        %659 = vmatprep.subr.mxu0 0.0
        %660 = vmatpush1.msra.mxu0 0.0
        %661 = vmatprep.subr.mxu0 0.0
        %662 = vmatpush1.msra.mxu0 0.0
        %663 = vmatprep.subr.mxu0 0.0
        %664 = vmatpush1.msra.mxu0 0.0
        %665 = vmatprep.subr.mxu0 0.0
        %666 = vmatpush1.msra.mxu0 0.0
        %667 = vmatprep.subr.mxu0 0.0
        %668 = vmatpush1.msra.mxu0 0.0
        %669 = vmatprep.subr.mxu0 0.0
        %670 = vmatpush1.msra.mxu0 0.0
        %671 = vmatprep.subr.mxu0 0.0
        %672 = vmatpush1.msra.mxu0 0.0
        %673 = vmatprep.subr.mxu0 0.0
        %674 = vmatpush1.msra.mxu0 0.0
        %675 = vmatprep.subr.mxu0 0.0
        %676 = vmatpush1.msra.mxu0 0.0
        %677 = vmatprep.subr.mxu0 0.0
        %678 = vmatpush1.msra.mxu0 0.0
        %679 = vmatprep.mubr.f32.mxu0 0.0
        %680 = vmatmul.mubr.f32.gmra.mrb[0].mxu0 %v610
        %v681 = vpop.f32.mrb[0].mxu0
        %v682 = vadd.f32 %v607, %v681
        %v683 = vpop.f32.mrb[0].mxu0
        %684 = vmatprep.mubr.f32.mxu0 0.0
        %685 = vmatmul.mubr.f32.gmra.mrb[0].mxu0 %v613
        %v686 = vpop.f32.mrb[0].mxu0
        %v687 = vadd.f32 %v607, %v686
        %v688 = vpop.f32.mrb[0].mxu0
        %689 = vdwg.mxu0
        %v690 = vld [vmem:[%s7] sm:$0xff]
        %v691 = vld [vmem:[%s7 + $0x8] sm:$0xff]
        %v692 = vld [vmem:[%s7 + $0x10] sm:$0xff]
        %v693 = vld [vmem:[%s7 + $0x18] sm:$0xff]
        %v694 = vld [vmem:[%s8] sm:$0x1]
        %v696 = vlaneseq
        %v697 = vshrl.u32 %v696, 7
        %v698 = vsub.s32 0, %v697
        %v699 = vrot.slane %v694, %v698
        %701 = vmatprep.subr.mxu0 0.0
        %702 = vmatpush1.msra.mxu0 %v690
        %703 = vmatprep.subr.mxu0 0.0
        %704 = vmatpush1.msra.mxu0 %v691
        %705 = vmatprep.subr.mxu0 0.0
        %706 = vmatpush1.msra.mxu0 %v692
        %707 = vmatprep.subr.mxu0 0.0
        %708 = vmatpush1.msra.mxu0 %v693
        %709 = vmatprep.subr.mxu0 0.0
        %710 = vmatpush1.msra.mxu0 0.0
        %711 = vmatprep.subr.mxu0 0.0
        %712 = vmatpush1.msra.mxu0 0.0
        %713 = vmatprep.subr.mxu0 0.0
        %714 = vmatpush1.msra.mxu0 0.0
        %715 = vmatprep.subr.mxu0 0.0
        %716 = vmatpush1.msra.mxu0 0.0
        %717 = vmatprep.subr.mxu0 0.0
        %718 = vmatpush1.msra.mxu0 0.0
        %719 = vmatprep.subr.mxu0 0.0
        %720 = vmatpush1.msra.mxu0 0.0
        %721 = vmatprep.subr.mxu0 0.0
        %722 = vmatpush1.msra.mxu0 0.0
        %723 = vmatprep.subr.mxu0 0.0
        %724 = vmatpush1.msra.mxu0 0.0
        %725 = vmatprep.subr.mxu0 0.0
        %726 = vmatpush1.msra.mxu0 0.0
        %727 = vmatprep.subr.mxu0 0.0
        %728 = vmatpush1.msra.mxu0 0.0
        %729 = vmatprep.subr.mxu0 0.0
        %730 = vmatpush1.msra.mxu0 0.0
        %731 = vmatprep.subr.mxu0 0.0
        %732 = vmatpush1.msra.mxu0 0.0
        %733 = vmatprep.subr.mxu0 0.0
        %734 = vmatpush1.msra.mxu0 0.0
        %735 = vmatprep.subr.mxu0 0.0
        %736 = vmatpush1.msra.mxu0 0.0
        %737 = vmatprep.subr.mxu0 0.0
        %738 = vmatpush1.msra.mxu0 0.0
        %739 = vmatprep.subr.mxu0 0.0
        %740 = vmatpush1.msra.mxu0 0.0
        %741 = vmatprep.subr.mxu0 0.0
        %742 = vmatpush1.msra.mxu0 0.0
        %743 = vmatprep.subr.mxu0 0.0
        %744 = vmatpush1.msra.mxu0 0.0
        %745 = vmatprep.subr.mxu0 0.0
        %746 = vmatpush1.msra.mxu0 0.0
        %747 = vmatprep.subr.mxu0 0.0
        %748 = vmatpush1.msra.mxu0 0.0
        %749 = vmatprep.subr.mxu0 0.0
        %750 = vmatpush1.msra.mxu0 0.0
        %751 = vmatprep.subr.mxu0 0.0
        %752 = vmatpush1.msra.mxu0 0.0
        %753 = vmatprep.subr.mxu0 0.0
        %754 = vmatpush1.msra.mxu0 0.0
        %755 = vmatprep.subr.mxu0 0.0
        %756 = vmatpush1.msra.mxu0 0.0
        %757 = vmatprep.subr.mxu0 0.0
        %758 = vmatpush1.msra.mxu0 0.0
        %759 = vmatprep.subr.mxu0 0.0
        %760 = vmatpush1.msra.mxu0 0.0
        %761 = vmatprep.subr.mxu0 0.0
        %762 = vmatpush1.msra.mxu0 0.0
        %763 = vmatprep.subr.mxu0 0.0
        %764 = vmatpush1.msra.mxu0 0.0
        %765 = vmatprep.mubr.f32.mxu0 0.0
        %766 = vmatmul.mubr.f32.gmra.mrb[0].mxu0 %v610
        %v767 = vpop.f32.mrb[0].mxu0
        %v768 = vadd.f32 %v699, %v767
        %v769 = vpop.f32.mrb[0].mxu0
        %770 = vmatprep.mubr.f32.mxu0 0.0
        %771 = vmatmul.mubr.f32.gmra.mrb[0].mxu0 %v613
        %v772 = vpop.f32.mrb[0].mxu0
        %v773 = vadd.f32 %v699, %v772
        %v774 = vpop.f32.mrb[0].mxu0
        %775 = vdwg.mxu0
        %v776 = vld [vmem:[%s9] sm:$0x1]
        %v777 = vld [vmem:[%s10] sm:$0x1]
        %v779 = vlaneseq
        %v780 = vshrl.u32 %v779, 7
        %v781 = vsub.s32 0, %v780
        %v782 = vrot.slane %v776, %v781
        %v784 = vsub.f32 %v782, %v768
        %v785 = vsub.f32 %v782, %v773
        %v786 = vmax.f32 %v784, 0.0
        %v787 = vmax.f32 %v785, 0.0
        %v788 = vand.u32 2147483647, %v784
        %v789 = vand.u32 2147483647, %v785
        %v790 = vsub.f32 0.0, %v788
        %v791 = vsub.f32 0.0, %v789
        %v792 = vmul.f32 %v790, 1.442695
        %v793 = vpow.pop %v792
        %v794 = vmul.f32 %v791, 1.442695
        %v795 = vpow.pop %v794
        %v796 = vadd.f32 %v793, 1.0
        %v797 = vlog2.pop %v796
        %v798 = vmul.f32 %v797, 0.6931472
        %v799 = vmul.f32 -0.5, %v793
        %v800 = vadd.f32 %v799, 1.0
        %v801 = vmul.f32 %v800, %v793
        %v802 = vand.u32 2147483647, %v793
        %vm803 = vcmp.lt.f32.partialorder %v802, 0.0004427343
        %v804 = vsel %vm803, %v801, %v798
        %v805 = vadd.f32 %v795, 1.0
        %v806 = vlog2.pop %v805
        %v807 = vmul.f32 %v806, 0.6931472
        %v808 = vmul.f32 -0.5, %v795
        %v809 = vadd.f32 %v808, 1.0
        %v810 = vmul.f32 %v809, %v795
        %v811 = vand.u32 2147483647, %v795
        %vm812 = vcmp.lt.f32.partialorder %v811, 0.0004427343
        %v813 = vsel %vm812, %v810, %v807
        %v814 = vadd.f32 %v786, %v804
        %v815 = vadd.f32 %v787, %v813
        %v816 = vsub.f32 %v782, %v814
        %v817 = vsub.f32 %v782, %v815
        %v819 = vlaneseq
        %v820 = vshrl.u32 %v819, 7
        %v821 = vsub.s32 0, %v820
        %v822 = vrot.slane %v777, %v821
        %v824 = vsub.f32 %v816, %v822
        %v825 = vsub.f32 %v817, %v822
        %v826 = vmax.f32 %v824, 0.0
        %v827 = vmax.f32 %v825, 0.0
        %v828 = vand.u32 2147483647, %v824
        %v829 = vand.u32 2147483647, %v825
        %v830 = vsub.f32 0.0, %v828
        %v831 = vsub.f32 0.0, %v829
        %v832 = vmul.f32 %v830, 1.442695
        %v833 = vpow.pop %v832
        %v834 = vmul.f32 %v831, 1.442695
        %v835 = vpow.pop %v834
        %v836 = vadd.f32 %v833, 1.0
        %v837 = vlog2.pop %v836
        %v838 = vmul.f32 %v837, 0.6931472
        %v839 = vmul.f32 -0.5, %v833
        %v840 = vadd.f32 %v839, 1.0
        %v841 = vmul.f32 %v840, %v833
        %v842 = vand.u32 2147483647, %v833
        %vm843 = vcmp.lt.f32.partialorder %v842, 0.0004427343
        %v844 = vsel %vm843, %v841, %v838
        %v845 = vadd.f32 %v835, 1.0
        %v846 = vlog2.pop %v845
        %v847 = vmul.f32 %v846, 0.6931472
        %v848 = vmul.f32 -0.5, %v835
        %v849 = vadd.f32 %v848, 1.0
        %v850 = vmul.f32 %v849, %v835
        %v851 = vand.u32 2147483647, %v835
        %vm852 = vcmp.lt.f32.partialorder %v851, 0.0004427343
        %v853 = vsel %vm852, %v850, %v847
        %v854 = vadd.f32 %v826, %v844
        %v855 = vadd.f32 %v827, %v853
        %v856 = vadd.f32 %v822, %v854
        %v857 = vadd.f32 %v822, %v855
        %v858 = vmul.f32 %v856, 0.5
        %v859 = vmul.f32 %v857, 0.5
        %v860 = vmul.f32 %v858, 1.442695
        %v861 = vpow.pop %v860
        %v862 = vmul.f32 %v859, 1.442695
        %v863 = vpow.pop %v862
        %866 = vrot.lane.b32.xlu0 %v861, 8
        %v867 = vpop.permute.xlu0 %866
        %868 = vrot.lane.b32.xlu0 %v863, 8
        %v869 = vpop.permute.xlu0 %868
        %vm872 = vcmask 64512
        %v873 = vsel %vm872, %v682, %v867
        %v874 = vsel %vm872, %v687, %v869
        %875 = vst.msk [vmem:[%s388] sm:$0xff] %vm419, %v873
        %876 = vst.msk [vmem:[%s388 + $0x8] sm:$0xff] %vm419, %v874
        %s877 = sand.u32 %s266, 1
        %s878 = sand.u32 %s266, 1
        %s879 = smul.addr %s878, 16
        %s880 = scalar_lea.vmem [#allocation2], %s879
        // Predicated region
        $region65: #{tpu_custom_call.1} parent=63 // pred_check
          %p881 = pneg %p276
        $region66: #{tpu_custom_call.1} parent=63 // pred_check_branch
          %883 = sbr.rel (%p881) target = $region68
        $region67: #{tpu_custom_call.1} parent=63 // pred_region
          %s884 = smul.u32 2, %s22
          %s885 = ssub.s32 7, %s884
          %p886 = scmp.lt.s32.totalorder %s885, 2
          %s887 = scalar_select %p886, %s885, 2
          %s888 = smul.u32 128, %s887
          %p889 = scmp.ne.s32.totalorder 0, %s888
          %s890 = smul.addr %s884, 8
          %s891 = scalar_lea.vmem %s11, %s890
          // Predicated region
          $region69: #{tpu_custom_call.1} parent=67 // pred_check
            %p892 = pneg %p889
          $region70: #{tpu_custom_call.1} parent=67 // pred_check_branch
            %894 = sbr.rel (%p892) target = $region72
          $region71: #{tpu_custom_call.1} parent=67 // pred_region
            // Predicated region
            $region73: #{tpu_custom_call.1} parent=71 // pred_check
              _
            $region74: #{tpu_custom_call.1} parent=71 // pred_check_branch
              %896 = sbr.rel (0) target = $region76
            $region75: #{tpu_custom_call.1} parent=71 // pred_region
              // Predicated region
              $region95: #{tpu_custom_call.1} parent=75 // pred_check
                _
              $region96: #{tpu_custom_call.1} parent=75 // pred_check_branch
                %947 = sbr.rel (0) target = $region98
              $region97: #{tpu_custom_call.1} parent=75 // pred_region
                %s948 = sshrl.u32 %s887, 1
                // While loop
                $region99: #{tpu_custom_call.1} parent=97 // loop_pre_header
                  _
                $region100: #{tpu_custom_call.1} parent=97 // loop_header
                  %s950 = sphi 0, %s952
                  %p951 = scmp.ge.s32.totalorder %s950, %s948
                  %s955 = sphi 0, %s964
                  %s956 = sphi %s880, %s967
                  %s957 = sphi %s891, %s968
                $region101: #{tpu_custom_call.1} parent=97 // loop_header_branch
                  %954 = sbr.rel (%p951) target = $region105
                $region102: #{tpu_custom_call.1} parent=97 // loop_body
                  %v958 = vld [vmem:[%s956] sm:$0xff]
                  %959 = vst [vmem:[%s957] sm:$0xff] %v958
                  %v960 = vld [vmem:[%s956 + $0x8] sm:$0xff]
                  %961 = vst [vmem:[%s957 + $0x8] sm:$0xff] %v960
                  %s962 = sadd.s32 1, %s955
                  %p963 = scmp.ge.s32.totalorder %s962, %s948
                  %s964 = scalar_select %p963, 0, %s962
                  %s965 = smul.u32 %s964, 16
                  %s966 = smul.u32 %s964, 16
                  %s967 = scalar_lea.vmem %s880, %s965 [#allocation2]
                  %s968 = scalar_lea.vmem %s891, %s966
                $region103: #{tpu_custom_call.1} parent=97 // loop_footer
                  %s952 = sadd.s32 %s950, 1
                $region104: #{tpu_custom_call.1} parent=97 // loop_footer_branch
                  %949 = sbr.rel target = $region100
                $region105: #{tpu_custom_call.1} parent=97 // loop_exit
                  _
                %s969 = sshrl.u32 %s887, 1
                %s970 = sand.u32 %s887, 1
                %s971 = smul.u32 %s969, 2
                %s972 = smul.u32 8, %s971
                %s973 = scalar_lea.vmem %s880, %s972 [#allocation2]
                %s974 = smul.u32 8, %s971
                %s975 = scalar_lea.vmem %s891, %s974
                // While loop
                $region106: #{tpu_custom_call.1} parent=97 // loop_pre_header
                  _
                $region107: #{tpu_custom_call.1} parent=97 // loop_header
                  %s977 = sphi 0, %s979
                  %p978 = scmp.ge.s32.totalorder %s977, %s970
                  %s982 = sphi 0, %s989
                  %s983 = sphi %s973, %s992
                  %s984 = sphi %s975, %s993
                $region108: #{tpu_custom_call.1} parent=97 // loop_header_branch
                  %981 = sbr.rel (%p978) target = $region112
                $region109: #{tpu_custom_call.1} parent=97 // loop_body
                  %v985 = vld [vmem:[%s983] sm:$0xff]
                  %986 = vst [vmem:[%s984] sm:$0xff] %v985
                  %s987 = sadd.s32 1, %s982
                  %p988 = scmp.ge.s32.totalorder %s987, %s970
                  %s989 = scalar_select %p988, 0, %s987
                  %s990 = smul.u32 %s989, 8
                  %s991 = smul.u32 %s989, 8
                  %s992 = scalar_lea.vmem %s973, %s990 [#allocation2]
                  %s993 = scalar_lea.vmem %s975, %s991
                $region110: #{tpu_custom_call.1} parent=97 // loop_footer
                  %s979 = sadd.s32 %s977, 1
                $region111: #{tpu_custom_call.1} parent=97 // loop_footer_branch
                  %976 = sbr.rel target = $region107
                $region112: #{tpu_custom_call.1} parent=97 // loop_exit
                  _
              $region98: #{tpu_custom_call.1} parent=75 // pred_fallthru
                _
              // Predicated region
              $region113: #{tpu_custom_call.1} parent=75 // pred_check
                _
              $region114: #{tpu_custom_call.1} parent=75 // pred_check_branch
                %995 = sbr.rel target = $region116
              $region115: #{tpu_custom_call.1} parent=75 // pred_region
                _
              $region116: #{tpu_custom_call.1} parent=75 // pred_fallthru
                _
            $region76: #{tpu_custom_call.1} parent=71 // pred_fallthru
              _
            // Predicated region
            $region77: #{tpu_custom_call.1} parent=71 // pred_check
              _
            $region78: #{tpu_custom_call.1} parent=71 // pred_check_branch
              %898 = sbr.rel target = $region80
            $region79: #{tpu_custom_call.1} parent=71 // pred_region
              %s900 = sshrl.u32 %s887, 1
              // While loop
              $region81: #{tpu_custom_call.1} parent=79 // loop_pre_header
                _
              $region82: #{tpu_custom_call.1} parent=79 // loop_header
                %s902 = sphi 0, %s904
                %p903 = scmp.ge.s32.totalorder %s902, %s900
                %s907 = sphi 0, %s916
                %s908 = sphi %s880, %s919
                %s909 = sphi %s891, %s920
              $region83: #{tpu_custom_call.1} parent=79 // loop_header_branch
                %906 = sbr.rel (%p903) target = $region87
              $region84: #{tpu_custom_call.1} parent=79 // loop_body
                %v910 = vld [vmem:[%s908] sm:$0xff]
                %911 = vst [vmem:[%s909] sm:$0xff] %v910
                %v912 = vld [vmem:[%s908 + $0x8] sm:$0xff]
                %913 = vst [vmem:[%s909 + $0x8] sm:$0xff] %v912
                %s914 = sadd.s32 1, %s907
                %p915 = scmp.ge.s32.totalorder %s914, %s900
                %s916 = scalar_select %p915, 0, %s914
                %s917 = smul.u32 %s916, 16
                %s918 = smul.u32 %s916, 16
                %s919 = scalar_lea.vmem %s880, %s917 [#allocation2]
                %s920 = scalar_lea.vmem %s891, %s918
              $region85: #{tpu_custom_call.1} parent=79 // loop_footer
                %s904 = sadd.s32 %s902, 1
              $region86: #{tpu_custom_call.1} parent=79 // loop_footer_branch
                %901 = sbr.rel target = $region82
              $region87: #{tpu_custom_call.1} parent=79 // loop_exit
                _
              %s921 = sshrl.u32 %s887, 1
              %s922 = sand.u32 %s887, 1
              %s923 = smul.u32 %s921, 2
              %s924 = smul.u32 8, %s923
              %s925 = scalar_lea.vmem %s880, %s924 [#allocation2]
              %s926 = smul.u32 8, %s923
              %s927 = scalar_lea.vmem %s891, %s926
              // While loop
              $region88: #{tpu_custom_call.1} parent=79 // loop_pre_header
                _
              $region89: #{tpu_custom_call.1} parent=79 // loop_header
                %s929 = sphi 0, %s931
                %p930 = scmp.ge.s32.totalorder %s929, %s922
                %s934 = sphi 0, %s941
                %s935 = sphi %s925, %s944
                %s936 = sphi %s927, %s945
              $region90: #{tpu_custom_call.1} parent=79 // loop_header_branch
                %933 = sbr.rel (%p930) target = $region94
              $region91: #{tpu_custom_call.1} parent=79 // loop_body
                %v937 = vld [vmem:[%s935] sm:$0xff]
                %938 = vst [vmem:[%s936] sm:$0xff] %v937
                %s939 = sadd.s32 1, %s934
                %p940 = scmp.ge.s32.totalorder %s939, %s922
                %s941 = scalar_select %p940, 0, %s939
                %s942 = smul.u32 %s941, 8
                %s943 = smul.u32 %s941, 8
                %s944 = scalar_lea.vmem %s925, %s942 [#allocation2]
                %s945 = scalar_lea.vmem %s927, %s943
              $region92: #{tpu_custom_call.1} parent=79 // loop_footer
                %s931 = sadd.s32 %s929, 1
              $region93: #{tpu_custom_call.1} parent=79 // loop_footer_branch
                %928 = sbr.rel target = $region89
              $region94: #{tpu_custom_call.1} parent=79 // loop_exit
                _
            $region80: #{tpu_custom_call.1} parent=71 // pred_fallthru
              _
          $region72: #{tpu_custom_call.1} parent=67 // pred_fallthru
            _
          %996 = vnop
        $region68: #{tpu_custom_call.1} parent=63 // pred_fallthru
          _
      $region64: #{tpu_custom_call.1} parent=5 // pred_fallthru
        _
      %p997 = scmp.le.s32.totalorder 2, %s17
      // Predicated region
      $region117: #{tpu_custom_call.1} parent=5 // pred_check
        %p998 = pneg %p997
      $region118: #{tpu_custom_call.1} parent=5 // pred_check_branch
        %1000 = sbr.rel (%p998) target = $region120
      $region119: #{tpu_custom_call.1} parent=5 // pred_region
        %s1001 = ssub.s32 %s17, 2
        // Predicated region
        $region121: #{tpu_custom_call.1} parent=119 // pred_check
          %p1002 = pneg %p282
        $region122: #{tpu_custom_call.1} parent=119 // pred_check_branch
          %1004 = sbr.rel (%p1002) target = $region124
        $region123: #{tpu_custom_call.1} parent=119 // pred_region
          %s1005 = sand.u32 %s267, 1
          %s1006 = sand.u32 %s267, 1
          %s1007 = smul.addr %s1006, 16
          %s1008 = scalar_lea.vmem [#allocation2], %s1007
        $region124: #{tpu_custom_call.1} parent=119 // pred_fallthru
          _
      $region120: #{tpu_custom_call.1} parent=5 // pred_fallthru
        _
    $region6: #{tpu_custom_call.1} parent=1 // loop_footer
      %s21 = sadd.s32 1, %s17
    $region7: #{tpu_custom_call.1} parent=1 // loop_footer_branch
      %16 = sbr.rel target = $region3
    $region8: #{tpu_custom_call.1} parent=1 // loop_exit
      _

</llo_original>
